<compile_context>
chip_gen: v7x
topology: tpu7x:2x2x1
jax: 0.10.0
libtpu: 0.0.40
codegen_flags: <defaults>
</compile_context>

<pallas_src>
import math

import jax
import jax.numpy as jnp
from jax.experimental import pallas as pl
from jax.experimental.pallas import tpu as pltpu


def _pick_tile(dim, target):
    """Largest divisor of `dim` that is <= target (never exceeds target unless dim <= target)."""
    if dim <= target:
        return dim
    for t in range(target, 0, -1):
        if dim % t == 0:
            return t
    return dim


# ----------------------- head-major QKV projection kernel -----------------------
# y[b, h, s, d] = sum_k x[b, s, k] * W_h[h, k, d]   (nn.Linear with pre-arranged weight)

def _proj_heads_kernel(x_ref, w_ref, o_ref, acc_ref):
    # x_ref: (1, tm, tk), w_ref: (1, tk, hd), o_ref: (1, 1, tm, hd)
    @pl.when(pl.program_id(3) == 0)
    def _init():
        acc_ref[...] = jnp.zeros_like(acc_ref)

    acc_ref[...] += jnp.dot(x_ref[0], w_ref[0], preferred_element_type=jnp.float32)

    @pl.when(pl.program_id(3) == pl.num_programs(3) - 1)
    def _store():
        o_ref[0, 0] = acc_ref[...].astype(o_ref.dtype)


def proj_heads(x, w_heads, *, tm_target=256, tk_target=512):
    """x: (B, S, D), w_heads: (H, D, hd)  ->  (B, H, S, hd) written head-major directly."""
    B, S, D = x.shape
    H, D2, hd = w_heads.shape
    assert D == D2
    tm = _pick_tile(S, tm_target)
    tk = _pick_tile(D, tk_target)
    grid = (B, H, S // tm, D // tk)

    return pl.pallas_call(
        _proj_heads_kernel,
        out_shape=jax.ShapeDtypeStruct((B, H, S, hd), x.dtype),
        grid_spec=pltpu.PrefetchScalarGridSpec(
            num_scalar_prefetch=0,
            grid=grid,
            in_specs=[
                pl.BlockSpec((1, tm, tk), lambda b, h, i, k: (b, i, k)),
                pl.BlockSpec((1, tk, hd), lambda b, h, i, k: (h, k, 0)),
            ],
            out_specs=pl.BlockSpec((1, 1, tm, hd), lambda b, h, i, k: (b, h, i, 0)),
            scratch_shapes=[pltpu.VMEM((tm, hd), jnp.float32)],
        ),
        compiler_params=pltpu.CompilerParams(
            dimension_semantics=("parallel", "parallel", "parallel", "arbitrary"),
        ),
    )(x, w_heads)


# ----------------------- head-major output projection kernel -----------------------
# out[b, s, n] = sum_{h, d} attn[b, h, s, d] * Wo_h[h, d, n]  (heads are the reduction axis)

def _out_proj_kernel(a_ref, w_ref, o_ref, acc_ref):
    # a_ref: (1, 1, tm, hd), w_ref: (1, hd, tn), o_ref: (1, tm, tn)
    @pl.when(pl.program_id(3) == 0)
    def _init():
        acc_ref[...] = jnp.zeros_like(acc_ref)

    acc_ref[...] += jnp.dot(a_ref[0, 0], w_ref[0], preferred_element_type=jnp.float32)

    @pl.when(pl.program_id(3) == pl.num_programs(3) - 1)
    def _store():
        o_ref[0] = acc_ref[...].astype(o_ref.dtype)


def out_proj(attn, w_heads, *, tm_target=256, tn_target=512):
    """attn: (B, H, S, hd) head-major, w_heads: (H, hd, Dout)  ->  (B, S, Dout)."""
    B, H, S, hd = attn.shape
    H2, hd2, Dout = w_heads.shape
    assert H == H2 and hd == hd2
    tm = _pick_tile(S, tm_target)
    tn = _pick_tile(Dout, tn_target)
    grid = (B, S // tm, Dout // tn, H)

    return pl.pallas_call(
        _out_proj_kernel,
        out_shape=jax.ShapeDtypeStruct((B, S, Dout), attn.dtype),
        grid_spec=pltpu.PrefetchScalarGridSpec(
            num_scalar_prefetch=0,
            grid=grid,
            in_specs=[
                pl.BlockSpec((1, 1, tm, hd), lambda b, i, j, h: (b, h, i, 0)),
                pl.BlockSpec((1, hd, tn), lambda b, i, j, h: (h, 0, j)),
            ],
            out_specs=pl.BlockSpec((1, tm, tn), lambda b, i, j, h: (b, i, j)),
            scratch_shapes=[pltpu.VMEM((tm, tn), jnp.float32)],
        ),
        compiler_params=pltpu.CompilerParams(
            dimension_semantics=("parallel", "parallel", "parallel", "arbitrary"),
        ),
    )(attn, w_heads)


# ----------------------- flash-style GQA attention kernel -----------------------

def _gqa_flash_kernel(q_ref, k_ref, v_ref, o_ref, s_ref, lse_ref, m_sc, l_sc, acc_sc):
    # q_ref: (1, G, tq, hd)   the G query heads sharing this KV head
    # k_ref/v_ref: (1, 1, tkv, hd)
    ki = pl.program_id(3)
    G, tq, hd = q_ref.shape[1], q_ref.shape[2], q_ref.shape[3]
    tkv = k_ref.shape[2]
    scale = 1.0 / math.sqrt(hd)

    @pl.when(ki == 0)
    def _init():
        m_sc[...] = jnp.full_like(m_sc, -jnp.inf)
        l_sc[...] = jnp.zeros_like(l_sc)
        acc_sc[...] = jnp.zeros_like(acc_sc)

    # Stack the group's query heads into one MXU LHS; fold 1/sqrt(d_k) into Q once.
    q = q_ref[0].reshape(G * tq, hd) * scale
    k = k_ref[0, 0]
    v = v_ref[0, 0]

    # scores = q @ k.T, expressed without an in-kernel transpose (contract hd on both).
    s = jax.lax.dot_general(
        q, k,
        dimension_numbers=(((1,), (1,)), ((), ())),
        preferred_element_type=jnp.float32,
    )  # (G*tq, tkv)

    # Write raw scaled scores tiled along KV; normalization (w = exp(s - lse))
    # happens outside the kernel, so nothing O(S)-wide stays live in VMEM.
    s_ref[0] = s.reshape(G, tq, tkv).astype(s_ref.dtype)

    # Online softmax update.
    m_prev = m_sc[...]
    m_new = jnp.maximum(m_prev, jnp.max(s, axis=-1, keepdims=True))
    alpha = jnp.exp(m_prev - m_new)
    p = jnp.exp(s - m_new)
    l_sc[...] = alpha * l_sc[...] + jnp.sum(p, axis=-1, keepdims=True)
    acc_sc[...] = alpha * acc_sc[...] + jnp.dot(
        p.astype(v.dtype), v, preferred_element_type=jnp.float32)
    m_sc[...] = m_new

    @pl.when(ki == pl.num_programs(3) - 1)
    def _finalize():
        # Exact reciprocal keeps the 1e-4 tolerance on returned weights/output;
        # pl.reciprocal(..., approx=True) moves it to the EUP if ~2^-12 error is OK.
        inv = pl.reciprocal(l_sc[...], approx=False)
        o_ref[0] = (acc_sc[...] * inv).reshape(G, tq, hd).astype(o_ref.dtype)
        lse_ref[0] = (m_sc[...] + jnp.log(l_sc[...])).reshape(G, tq, 1)


def gqa_flash_attention(q, k, v, num_q_per_kv, *, tq_target=128, tkv_target=256):
    """q: (B, H, S, hd); k, v: (B, Hkv, S, hd).

    Returns (out (B, H, S, hd), raw scaled scores (B, H, S, S), lse (B, H, S, 1)).
    GQA head sharing is expressed purely via BlockSpec index_maps: all
    num_q_per_kv query heads of a group form one block over the H axis.
    """
    B, H, S, hd = q.shape
    _, Hkv, Skv, _ = k.shape
    G = num_q_per_kv
    assert H == Hkv * G and S == Skv

    tq = _pick_tile(S, tq_target)
    tkv = _pick_tile(S, tkv_target)
    grid = (B, Hkv, S // tq, S // tkv)

    q_spec = pl.BlockSpec((1, G, tq, hd), lambda b, h, qi, ki: (b, h, qi, 0))
    kv_spec = pl.BlockSpec((1, 1, tkv, hd), lambda b, h, qi, ki: (b, h, ki, 0))
    o_spec = pl.BlockSpec((1, G, tq, hd), lambda b, h, qi, ki: (b, h, qi, 0))
    s_spec = pl.BlockSpec((1, G, tq, tkv), lambda b, h, qi, ki: (b, h, qi, ki))
    lse_spec = pl.BlockSpec((1, G, tq, 1), lambda b, h, qi, ki: (b, h, qi, 0))

    return pl.pallas_call(
        _gqa_flash_kernel,
        out_shape=(
            jax.ShapeDtypeStruct((B, H, S, hd), q.dtype),
            jax.ShapeDtypeStruct((B, H, S, S), jnp.float32),
            jax.ShapeDtypeStruct((B, H, S, 1), jnp.float32),
        ),
        grid_spec=pltpu.PrefetchScalarGridSpec(
            num_scalar_prefetch=0,
            grid=grid,
            in_specs=[q_spec, kv_spec, kv_spec],
            out_specs=(o_spec, s_spec, lse_spec),
            scratch_shapes=[
                pltpu.VMEM((G * tq, 1), jnp.float32),   # running max m
                pltpu.VMEM((G * tq, 1), jnp.float32),   # running denom l
                pltpu.VMEM((G * tq, hd), jnp.float32),  # output accumulator
            ],
        ),
        compiler_params=pltpu.CompilerParams(
            dimension_semantics=("parallel", "parallel", "parallel", "arbitrary"),
        ),
    )(q, k, v)


# ----------------------- GQA module forward (glue in plain JAX) -----------------------

def init_gqa_params(key, model_dim, num_heads, num_kv_heads, dtype=jnp.float32):
    head_dim = model_dim // num_heads
    kv_dim = num_kv_heads * head_dim
    k1, k2, k3, k4 = jax.random.split(key, 4)
    bound = 1.0 / math.sqrt(model_dim)  # PyTorch nn.Linear default: U(-1/sqrt(in), 1/sqrt(in))
    return {
        "wq": jax.random.uniform(k1, (model_dim, model_dim), dtype, -bound, bound),
        "wk": jax.random.uniform(k2, (kv_dim, model_dim), dtype, -bound, bound),
        "wv": jax.random.uniform(k3, (kv_dim, model_dim), dtype, -bound, bound),
        "wo": jax.random.uniform(k4, (model_dim, model_dim), dtype, -bound, bound),
    }


def gqa_forward(x, params, num_heads, num_kv_heads):
    B, S, D = x.shape
    hd = D // num_heads
    G = num_heads // num_kv_heads
    H, Hkv = num_heads, num_kv_heads

    # One-time head-major weight re-layout (weights are static; in a real module this
    # happens once at init).  Gives the kernels standard no-transpose contractions.
    wq_h = params["wq"].reshape(H, hd, D).transpose(0, 2, 1)     # (H, D, hd)
    wk_h = params["wk"].reshape(Hkv, hd, D).transpose(0, 2, 1)   # (Hkv, D, hd)
    wv_h = params["wv"].reshape(Hkv, hd, D).transpose(0, 2, 1)   # (Hkv, D, hd)
    wo_h = params["wo"].reshape(D, H, hd).transpose(1, 2, 0)     # (H, hd, D)

    # Projections write head-major (B, H, S, hd) directly: no XLA transposes.
    q = proj_heads(x, wq_h)
    k = proj_heads(x, wk_h)
    v = proj_heads(x, wv_h)

    attn_out, scores, lse = gqa_flash_attention(q, k, v, G)
    # Normalize raw scores into attention weights in one fused elementwise pass.
    attn_weights = jnp.exp(scores - lse)

    out = out_proj(attn_out, wo_h)  # reads head-major input directly: no transpose.
    return out, attn_weights


# ----------------------- pure-JAX reference for verification -----------------------

def gqa_reference(x, params, num_heads, num_kv_heads):
    B, S, D = x.shape
    head_dim = D // num_heads
    num_q_per_kv = num_heads // num_kv_heads

    q = (x @ params["wq"].T).reshape(B, S, num_heads, head_dim).transpose(0, 2, 1, 3)
    k = (x @ params["wk"].T).reshape(B, S, num_kv_heads, head_dim).transpose(0, 2, 1, 3)
    v = (x @ params["wv"].T).reshape(B, S, num_kv_heads, head_dim).transpose(0, 2, 1, 3)
    if num_q_per_kv > 1:
        k = jnp.repeat(k, num_q_per_kv, axis=1)
        v = jnp.repeat(v, num_q_per_kv, axis=1)
    scores = jnp.einsum("bhqd,bhkd->bhqk", q, k) / math.sqrt(head_dim)
    w = jax.nn.softmax(scores, axis=-1)
    o = jnp.einsum("bhqk,bhkd->bhqd", w, v)
    o = o.transpose(0, 2, 1, 3).reshape(B, S, D)
    out = o @ params["wo"].T
    return out, w


if __name__ == "__main__":
    # Small, GQA-consistent configuration (dropout_p=0.0, mask=None as in the module defaults).
    batch = 2
    seq_len = 8
    model_dim = 32
    num_heads = 4
    num_kv_heads = 2  # -> num_q_per_kv = 2, head_dim = 8

    key = jax.random.PRNGKey(0)
    kx, kp = jax.random.split(key)
    x = jax.random.normal(kx, (batch, seq_len, model_dim), dtype=jnp.float32)
    params = init_gqa_params(kp, model_dim, num_heads, num_kv_heads)

    out, attn_w = gqa_forward(x, params, num_heads, num_kv_heads)
    out = jax.block_until_ready(out)
    attn_w = jax.block_until_ready(attn_w)

    ref_out, ref_w = gqa_reference(x, params, num_heads, num_kv_heads)
    assert out.shape == (batch, seq_len, model_dim)
    assert attn_w.shape == (batch, num_heads, seq_len, seq_len)
    assert jnp.allclose(out, ref_out, atol=1e-4, rtol=1e-4)
    assert jnp.allclose(attn_w, ref_w, atol=1e-4, rtol=1e-4)

    print("KERNEL_OK")
</pallas_src>

<mosaic_0001>
module attributes {stable_mosaic.version = 11 : i64} {
  func.func @_proj_heads_kernel(%arg0: i32, %arg1: i32, %arg2: i32, %arg3: i32, %arg4: memref<1x8x32xf32, #tpu.memory_space<vmem>>, %arg5: memref<1x32x8xf32, #tpu.memory_space<vmem>>, %arg6: memref<1x1x8x8xf32, #tpu.memory_space<vmem>>, %arg7: memref<8x8xf32, #tpu.memory_space<vmem>>) attributes {dimension_semantics = [#tpu.dimension_semantics<parallel>, #tpu.dimension_semantics<parallel>, #tpu.dimension_semantics<parallel>, #tpu.dimension_semantics<arbitrary>], iteration_bounds = array<i64: 2, 4, 1, 1>, scalar_prefetch = 0 : i64, scratch_operands = 1 : i64, tpu.core_type = #tpu.core_type<tc>, window_params = [{transform_indices = @transform_0, window_bounds = array<i64: 1, 8, 32>}, {transform_indices = @transform_1, window_bounds = array<i64: 1, 32, 8>}, {transform_indices = @transform_2, window_bounds = array<i64: 1, 1, 8, 8>}]} {
    %c0_i32 = arith.constant 0 : i32
    %0 = arith.cmpi eq, %arg3, %c0_i32 : i32
    %1 = arith.extui %0 : i1 to i32
    %c0_i32_0 = arith.constant 0 : i32
    %2 = arith.cmpi ne, %1, %c0_i32_0 : i32
    scf.if %2 {
      %cst_12 = arith.constant 0.000000e+00 : f32
      %14 = vector.broadcast %cst_12 : f32 to vector<8x8xf32>
      %c0_13 = arith.constant 0 : index
      %c0_14 = arith.constant 0 : index
      %15 = vector.load %arg7[%c0_13, %c0_14] : memref<8x8xf32, #tpu.memory_space<vmem>>, vector<8x8xf32>
      tpu.vector_store %arg7[%c0_13, %c0_14], %14 {strides = array<i32>} : memref<8x8xf32, #tpu.memory_space<vmem>>, vector<8x8xf32>,
    } else {
    }
    %c0 = arith.constant 0 : index
    %c0_1 = arith.constant 0 : index
    %3 = vector.load %arg7[%c0, %c0_1] : memref<8x8xf32, #tpu.memory_space<vmem>>, vector<8x8xf32>
    %c0_2 = arith.constant 0 : index
    %c0_3 = arith.constant 0 : index
    %c0_4 = arith.constant 0 : index
    %4 = vector.load %arg4[%c0_2, %c0_3, %c0_4] : memref<1x8x32xf32, #tpu.memory_space<vmem>>, vector<1x8x32xf32>
    %5 = vector.shape_cast %4 : vector<1x8x32xf32> to vector<8x32xf32>
    %c0_5 = arith.constant 0 : index
    %c0_6 = arith.constant 0 : index
    %c0_7 = arith.constant 0 : index
    %6 = vector.load %arg5[%c0_5, %c0_6, %c0_7] : memref<1x32x8xf32, #tpu.memory_space<vmem>>, vector<1x32x8xf32>
    %7 = vector.shape_cast %6 : vector<1x32x8xf32> to vector<32x8xf32>
    %cst = arith.constant dense<0.000000e+00> : vector<8x8xf32>
    %8 = tpu.matmul %5, %7, %cst {dimension_numbers = #tpu.dot_dimension_numbers<[1], [0], [0], [1], [0, 0, 1, 1], [], []>} : vector<8x32xf32>, vector<32x8xf32>, vector<8x8xf32> -> vector<8x8xf32>
    %9 = arith.addf %3, %8 : vector<8x8xf32>
    %c0_8 = arith.constant 0 : index
    %c0_9 = arith.constant 0 : index
    %10 = vector.load %arg7[%c0_8, %c0_9] : memref<8x8xf32, #tpu.memory_space<vmem>>, vector<8x8xf32>
    tpu.vector_store %arg7[%c0_8, %c0_9], %9 {strides = array<i32>} : memref<8x8xf32, #tpu.memory_space<vmem>>, vector<8x8xf32>,
    %c0_i32_10 = arith.constant 0 : i32
    %11 = arith.cmpi eq, %arg3, %c0_i32_10 : i32
    %12 = arith.extui %11 : i1 to i32
    %c0_i32_11 = arith.constant 0 : i32
    %13 = arith.cmpi ne, %12, %c0_i32_11 : i32
    scf.if %13 {
      %c0_12 = arith.constant 0 : index
      %c0_13 = arith.constant 0 : index
      %14 = vector.load %arg7[%c0_12, %c0_13] : memref<8x8xf32, #tpu.memory_space<vmem>>, vector<8x8xf32>
      %c0_14 = arith.constant 0 : index
      %c0_15 = arith.constant 0 : index
      %c0_16 = arith.constant 0 : index
      %c0_17 = arith.constant 0 : index
      %15 = vector.load %arg6[%c0_14, %c0_15, %c0_16, %c0_17] : memref<1x1x8x8xf32, #tpu.memory_space<vmem>>, vector<1x1x8x8xf32>
      %16 = vector.shape_cast %15 : vector<1x1x8x8xf32> to vector<8x8xf32>
      %17 = vector.shape_cast %14 : vector<8x8xf32> to vector<1x1x8x8xf32>
      tpu.vector_store %arg6[%c0_14, %c0_15, %c0_16, %c0_17], %17 {strides = array<i32>} : memref<1x1x8x8xf32, #tpu.memory_space<vmem>>, vector<1x1x8x8xf32>,
    } else {
    }
    return
  }
  func.func @transform_0(%arg0: i32, %arg1: i32, %arg2: i32, %arg3: i32) -> (i32, i32, i32) {
    %c0_i32 = arith.constant 0 : i32
    return %arg0, %arg2, %arg3 : i32, i32, i32
  }
  func.func @transform_1(%arg0: i32, %arg1: i32, %arg2: i32, %arg3: i32) -> (i32, i32, i32) {
    %c0_i32 = arith.constant 0 : i32
    %c0_i32_0 = arith.constant 0 : i32
    return %arg1, %arg3, %c0_i32 : i32, i32, i32
  }
  func.func @transform_2(%arg0: i32, %arg1: i32, %arg2: i32, %arg3: i32) -> (i32, i32, i32, i32) {
    %c0_i32 = arith.constant 0 : i32
    %c0_i32_0 = arith.constant 0 : i32
    return %arg0, %arg1, %arg2, %c0_i32 : i32, i32, i32, i32
  }
}

</mosaic_0001>

<llo_original>
// kernel: tpu_custom_call.1
$region0: #{tpu_custom_call.1}
  #allocation0 [shape = 'u32[]', space=smem, size = 0x4, offset = 0x4, fixed_abs, tag = 'smem constant byte address 0x4 - core index']
  #allocation1 [shape = 'u32[144,128]{1,0:T(1,128)}', space=vmem, size = 0x12000, scoped, tag = 'internal scratch']
  #allocation2 [shape = 'f32[8,8]{1,0:T(8,128)}', space=vmem, size = 0x1000, scoped, tag = 'scratch operand']
  %s0 = inlined_call_operand.vmem [shape: f32[2,8,32], index: 0, kind: input, shape index: {}]
  %s1 = inlined_call_operand.vmem [shape: f32[4,32,8], index: 1, kind: input, shape index: {}]
  %s2 = inlined_call_operand.hbm [shape: f32[2,4,8,8], index: 2, kind: output, shape index: {}]
  %s3 = sld [smem:[#allocation0]]
  $region49: #{tpu_custom_call.1} parent=0
    _
  %s5 = ssub.s32 1, %s3
  %s6 = scalar_select 0, %s5, %s3
  $region1: #{tpu_custom_call.1} parent=0
    #allocation3 [shape = 'u8[8192]{0}', space=vmem, size = 0x2000, scoped, tag = 'output window, operand 0']
    #allocation4 [shape = 's32[2]{0}', space=sflag, size = 0x8, scoped, tag = 'scoped memory for tpu_custom_call.1']
    %7 = vsyncpa [#allocation4], 0
    %s8 = scalar_lea.sflag [#allocation4], 1
    %9 = vsyncpa %s8, 0
    loop: start=0, step=1, limit=10
    $region2: #{tpu_custom_call.1} parent=1 // loop_pre_header
      _
    $region3: #{tpu_custom_call.1} parent=1 // loop_header
      %s11 = sphi 0, %s15
      %p12 = scmp.ge.s32.totalorder %s11, 10
      %s18 = sphi 0, %s44
      %s19 = sphi 0, %s40
      %s20 = sphi 0, %s36
      %s21 = sphi 0, %s32
      %s22 = sphi 0, %s18
      %s23 = sphi 0, %s19
      %s24 = sphi 0, %s20
      %s25 = sphi 0, %s21
      %s26 = sphi 0, %s22
      %s27 = sphi 0, %s23
      %s28 = sphi 0, %s24
      %s29 = sphi 0, %s25
      %s51 = sphi 0, %s53
      %s54 = sphi 0, %s51
      %s55 = sphi 0, %s54
      %s71 = sphi 0, %s55
      %s79 = sphi 0, %s81
      %s82 = sphi 0, %s79
      %s83 = sphi 0, %s82
      %s99 = sphi 0, %s83
      %s109 = sphi 0, %s111
      %s112 = sphi 0, %s109
      %s113 = sphi 0, %s112
      %s129 = sphi 0, %s113
    $region4: #{tpu_custom_call.1} parent=1 // loop_header_branch
      %14 = sbr.rel (%p12) target = $region8
    $region5: #{tpu_custom_call.1} parent=1 // loop_body
      %s16 = ssub.s32 %s11, 1
      %s17 = ssub.s32 %s11, 2
      %s30 = sadd.s32 1, %s21
      %p31 = scmp.ge.s32.totalorder %s30, 1
      %s32 = scalar_select %p31, 0, %s30
      %s33 = sadd.s32 1, %s20
      %s34 = scalar_select %p31, %s33, %s20
      %p35 = scmp.ge.s32.totalorder %s34, 1
      %s36 = scalar_select %p35, 0, %s34
      %s37 = sadd.s32 1, %s19
      %s38 = scalar_select %p35, %s37, %s19
      %p39 = scmp.ge.s32.totalorder %s38, 4
      %s40 = scalar_select %p39, 0, %s38
      %s41 = sadd.s32 1, %s18
      %s42 = scalar_select %p39, %s41, %s18
      %p43 = scmp.ge.s32.totalorder %s42, 2
      %s44 = scalar_select %p43, 0, %s42
      %s45 = ssub.s32 %s18, %s44
      %s46 = ssub.s32 %s20, %s36
      %s47 = sor.u32 %s45, %s46
      %s48 = ssub.s32 %s21, %s32
      %s49 = sor.u32 %s47, %s48
      %p50 = scmp.eq.s32.totalorder %s49, 0
      %s52 = sadd.s32 %s51, 1
      %s53 = scalar_select %p50, %s51, %s52
      %p56 = pneg %p50
      %p57 = scmp.eq.s32.totalorder %s11, 7
      %p58 = por %p56, %p57
      %p59 = scmp.ne.s32.totalorder %s51, %s54
      %p60 = scmp.eq.s32.totalorder %s11, 0
      %p61 = por %p59, %p60
      %p62 = scmp.ne.s32.totalorder %s51, %s54
      %p63 = scmp.eq.s32.totalorder %s16, 7
      %p64 = por %p62, %p63
      %p65 = scmp.ne.s32.totalorder %s54, %s55
      %p66 = scmp.eq.s32.totalorder %s16, 0
      %p67 = por %p65, %p66
      %p68 = scmp.ne.s32.totalorder %s54, %s55
      %p69 = scmp.eq.s32.totalorder %s17, 7
      %p70 = por %p68, %p69
      %p72 = scmp.ne.s32.totalorder %s55, %s71
      %p73 = scmp.eq.s32.totalorder %s17, 0
      %p74 = por %p72, %p73
      %s75 = ssub.s32 %s19, %s40
      %s76 = ssub.s32 %s21, %s32
      %s77 = sor.u32 %s75, %s76
      %p78 = scmp.eq.s32.totalorder %s77, 0
      %s80 = sadd.s32 %s79, 1
      %s81 = scalar_select %p78, %s79, %s80
      %p84 = pneg %p78
      %p85 = scmp.eq.s32.totalorder %s11, 7
      %p86 = por %p84, %p85
      %p87 = scmp.ne.s32.totalorder %s79, %s82
      %p88 = scmp.eq.s32.totalorder %s11, 0
      %p89 = por %p87, %p88
      %p90 = scmp.ne.s32.totalorder %s79, %s82
      %p91 = scmp.eq.s32.totalorder %s16, 7
      %p92 = por %p90, %p91
      %p93 = scmp.ne.s32.totalorder %s82, %s83
      %p94 = scmp.eq.s32.totalorder %s16, 0
      %p95 = por %p93, %p94
      %p96 = scmp.ne.s32.totalorder %s82, %s83
      %p97 = scmp.eq.s32.totalorder %s17, 7
      %p98 = por %p96, %p97
      %p100 = scmp.ne.s32.totalorder %s83, %s99
      %p101 = scmp.eq.s32.totalorder %s17, 0
      %p102 = por %p100, %p101
      %s103 = ssub.s32 %s18, %s44
      %s104 = ssub.s32 %s19, %s40
      %s105 = sor.u32 %s103, %s104
      %s106 = ssub.s32 %s20, %s36
      %s107 = sor.u32 %s105, %s106
      %p108 = scmp.eq.s32.totalorder %s107, 0
      %s110 = sadd.s32 %s109, 1
      %s111 = scalar_select %p108, %s109, %s110
      %p114 = pneg %p108
      %p115 = scmp.eq.s32.totalorder %s11, 7
      %p116 = por %p114, %p115
      %p117 = scmp.ne.s32.totalorder %s109, %s112
      %p118 = scmp.eq.s32.totalorder %s11, 0
      %p119 = por %p117, %p118
      %p120 = scmp.ne.s32.totalorder %s109, %s112
      %p121 = scmp.eq.s32.totalorder %s16, 7
      %p122 = por %p120, %p121
      %p123 = scmp.ne.s32.totalorder %s112, %s113
      %p124 = scmp.eq.s32.totalorder %s16, 0
      %p125 = por %p123, %p124
      %p126 = scmp.ne.s32.totalorder %s112, %s113
      %p127 = scmp.eq.s32.totalorder %s17, 7
      %p128 = por %p126, %p127
      %p130 = scmp.ne.s32.totalorder %s113, %s129
      %p131 = scmp.eq.s32.totalorder %s17, 0
      %p132 = por %p130, %p131
      %p133 = scmp.le.s32.totalorder 1, %s11
      %p134 = scmp.lt.s32.totalorder %s11, 9
      %p135 = pnand %p133, %p134
      %p136 = pneg %p135
      // Predicated region
      $region9: #{tpu_custom_call.1} parent=5 // pred_check
        _
      $region10: #{tpu_custom_call.1} parent=5 // pred_check_branch
        %138 = sbr.rel (%p135) target = $region12
      $region11: #{tpu_custom_call.1} parent=5 // pred_region
        %s139 = ssub.s32 %s11, 1
      $region12: #{tpu_custom_call.1} parent=5 // pred_fallthru
        _
      %p140 = scmp.lt.s32.totalorder %s11, 8
      // Predicated region
      $region13: #{tpu_custom_call.1} parent=5 // pred_check
        %p141 = pneg %p140
      $region14: #{tpu_custom_call.1} parent=5 // pred_check_branch
        %143 = sbr.rel (%p141) target = $region16
      $region15: #{tpu_custom_call.1} parent=5 // pred_region
        // Predicated region
        $region17: #{tpu_custom_call.1} parent=15 // pred_check
          %p144 = pneg %p61
        $region18: #{tpu_custom_call.1} parent=15 // pred_check_branch
          %146 = sbr.rel (%p144) target = $region20
        $region19: #{tpu_custom_call.1} parent=15 // pred_region
          %p147 = scmp.lt.s32.totalorder %s18, 1
          %s148 = scalar_select %p147, %s18, 1
          %p149 = scmp.lt.s32.totalorder %s20, 0
          %s150 = scalar_select %p149, %s20, 0
          %p151 = scmp.lt.s32.totalorder %s21, 0
          %s152 = scalar_select %p151, %s21, 0
          %s153 = sadd.s32 %s152, %s150
          %s154 = sadd.s32 %s153, %s148
          %s155 = smul.addr %s154, 8
          %s156 = scalar_lea.vmem %s0, %s155
        $region20: #{tpu_custom_call.1} parent=15 // pred_fallthru
          _
        // Predicated region
        $region21: #{tpu_custom_call.1} parent=15 // pred_check
          %p157 = pneg %p89
        $region22: #{tpu_custom_call.1} parent=15 // pred_check_branch
          %159 = sbr.rel (%p157) target = $region24
        $region23: #{tpu_custom_call.1} parent=15 // pred_region
          %s160 = smul.u32 4, %s21
          %p161 = scmp.lt.s32.totalorder %s19, 3
          %s162 = scalar_select %p161, %s19, 3
          %p163 = scmp.lt.s32.totalorder %s160, 3
          %s164 = scalar_select %p163, %s160, 3
          %s165 = smul.addr %s162, 4
          %s166 = sadd.s32 %s164, %s165
          %s167 = smul.addr %s166, 8
          %s168 = scalar_lea.vmem %s1, %s167
          %s169 = smul.u32 4, %s21
        $region24: #{tpu_custom_call.1} parent=15 // pred_fallthru
          _
      $region16: #{tpu_custom_call.1} parent=5 // pred_fallthru
        _
      %p170 = scmp.le.s32.totalorder 1, %s11
      %p171 = scmp.lt.s32.totalorder %s11, 9
      %p172 = pnand %p170, %p171
      %p173 = pneg %p172
      // Predicated region
      $region25: #{tpu_custom_call.1} parent=5 // pred_check
        _
      $region26: #{tpu_custom_call.1} parent=5 // pred_check_branch
        %175 = sbr.rel (%p172) target = $region28
      $region27: #{tpu_custom_call.1} parent=5 // pred_region
        %s176 = ssub.s32 %s11, 1
        %p177 = scmp.lt.s32.totalorder %s22, 1
        %s178 = scalar_select %p177, %s22, 1
        %p179 = scmp.lt.s32.totalorder %s24, 0
        %s180 = scalar_select %p179, %s24, 0
        %p181 = scmp.lt.s32.totalorder %s25, 0
        %s182 = scalar_select %p181, %s25, 0
        %s183 = sadd.s32 %s182, %s180
        %s184 = sadd.s32 %s183, %s178
        %s185 = smul.addr %s184, 8
        %s186 = scalar_lea.vmem %s0, %s185
        %p187 = pneg %p67
        %p188 = pneg %p64
        %s189 = smul.u32 4, %s25
        %p190 = scmp.lt.s32.totalorder %s23, 3
        %s191 = scalar_select %p190, %s23, 3
        %p192 = scmp.lt.s32.totalorder %s189, 3
        %s193 = scalar_select %p192, %s189, 3
        %s194 = smul.addr %s191, 4
        %s195 = sadd.s32 %s193, %s194
        %s196 = smul.addr %s195, 8
        %s197 = scalar_lea.vmem %s1, %s196
        %p198 = pneg %p95
        %p199 = pneg %p92
        %p200 = pneg %p125
        %p201 = pneg %p122
        %s202 = sand.u32 %s112, 1
        %s203 = scalar_lea.sflag [#allocation4], %s202
        %s204 = sand.u32 %s112, 1
        %s205 = smul.addr %s204, 8
        %s206 = scalar_lea.vmem [#allocation3], %s205
        %p207 = scmp.lt.s32.totalorder %s22, 1
        %s208 = scalar_select %p207, %s22, 1
        %p209 = scmp.lt.s32.totalorder %s24, 0
        %s210 = scalar_select %p209, %s24, 0
        %p211 = scmp.lt.s32.totalorder %s25, 0
        %s212 = scalar_select %p211, %s25, 0
        %s213 = sadd.s32 %s212, %s210
        %s214 = sadd.s32 %s213, %s208
        %s215 = smul.addr %s214, 8
        %s216 = scalar_lea.vmem %s0, %s215
        %s217 = smul.u32 4, %s25
        %p218 = scmp.lt.s32.totalorder %s23, 3
        %s219 = scalar_select %p218, %s23, 3
        %p220 = scmp.lt.s32.totalorder %s217, 3
        %s221 = scalar_select %p220, %s217, 3
        %s222 = smul.addr %s219, 4
        %s223 = sadd.s32 %s221, %s222
        %s224 = smul.addr %s223, 8
        %s225 = scalar_lea.vmem %s1, %s224
        %s226 = smul.u32 4, %s25
        %p227 = scmp.eq.s32.totalorder %s25, 0
        // Predicated region
        $region29: #{tpu_custom_call.1} parent=27 // pred_check
          %p228 = pneg %p227
        $region30: #{tpu_custom_call.1} parent=27 // pred_check_branch
          %230 = sbr.rel (%p228) target = $region32
        $region31: #{tpu_custom_call.1} parent=27 // pred_region
          %vm231 = vcmask 64512
          %232 = vst.msk [vmem:[#allocation2] sm:$0xff] %vm231, 0.0
        $region32: #{tpu_custom_call.1} parent=27 // pred_fallthru
          _
        %v233 = vld [vmem:[#allocation2] sm:$0xff]
        %v234 = vld [vmem:[%s216] sm:$0xff]
        %v235 = vld [vmem:[%s225] sm:$0xff]
        %v236 = vld [vmem:[%s225 + $0x8] sm:$0xff]
        %v237 = vld [vmem:[%s225 + $0x10] sm:$0xff]
        %v238 = vld [vmem:[%s225 + $0x18] sm:$0xff]
        %vm239 = vcmask 261120
        %v241 = vsel %vm239, %v234, 0
        %243 = vmatprep.subr.mxu0 0.0
        %244 = vmatpush1.msra.mxu0 %v235
        %245 = vmatprep.subr.mxu0 0.0
        %246 = vmatpush1.msra.mxu0 %v236
        %247 = vmatprep.subr.mxu0 0.0
        %248 = vmatpush1.msra.mxu0 %v237
        %249 = vmatprep.subr.mxu0 0.0
        %250 = vmatpush1.msra.mxu0 %v238
        %251 = vmatprep.subr.mxu0 0.0
        %252 = vmatpush1.msra.mxu0 0.0
        %253 = vmatprep.subr.mxu0 0.0
        %254 = vmatpush1.msra.mxu0 0.0
        %255 = vmatprep.subr.mxu0 0.0
        %256 = vmatpush1.msra.mxu0 0.0
        %257 = vmatprep.subr.mxu0 0.0
        %258 = vmatpush1.msra.mxu0 0.0
        %259 = vmatprep.subr.mxu0 0.0
        %260 = vmatpush1.msra.mxu0 0.0
        %261 = vmatprep.subr.mxu0 0.0
        %262 = vmatpush1.msra.mxu0 0.0
        %263 = vmatprep.subr.mxu0 0.0
        %264 = vmatpush1.msra.mxu0 0.0
        %265 = vmatprep.subr.mxu0 0.0
        %266 = vmatpush1.msra.mxu0 0.0
        %267 = vmatprep.subr.mxu0 0.0
        %268 = vmatpush1.msra.mxu0 0.0
        %269 = vmatprep.subr.mxu0 0.0
        %270 = vmatpush1.msra.mxu0 0.0
        %271 = vmatprep.subr.mxu0 0.0
        %272 = vmatpush1.msra.mxu0 0.0
        %273 = vmatprep.subr.mxu0 0.0
        %274 = vmatpush1.msra.mxu0 0.0
        %275 = vmatprep.subr.mxu0 0.0
        %276 = vmatpush1.msra.mxu0 0.0
        %277 = vmatprep.subr.mxu0 0.0
        %278 = vmatpush1.msra.mxu0 0.0
        %279 = vmatprep.subr.mxu0 0.0
        %280 = vmatpush1.msra.mxu0 0.0
        %281 = vmatprep.subr.mxu0 0.0
        %282 = vmatpush1.msra.mxu0 0.0
        %283 = vmatprep.subr.mxu0 0.0
        %284 = vmatpush1.msra.mxu0 0.0
        %285 = vmatprep.subr.mxu0 0.0
        %286 = vmatpush1.msra.mxu0 0.0
        %287 = vmatprep.subr.mxu0 0.0
        %288 = vmatpush1.msra.mxu0 0.0
        %289 = vmatprep.subr.mxu0 0.0
        %290 = vmatpush1.msra.mxu0 0.0
        %291 = vmatprep.subr.mxu0 0.0
        %292 = vmatpush1.msra.mxu0 0.0
        %293 = vmatprep.subr.mxu0 0.0
        %294 = vmatpush1.msra.mxu0 0.0
        %295 = vmatprep.subr.mxu0 0.0
        %296 = vmatpush1.msra.mxu0 0.0
        %297 = vmatprep.subr.mxu0 0.0
        %298 = vmatpush1.msra.mxu0 0.0
        %299 = vmatprep.subr.mxu0 0.0
        %300 = vmatpush1.msra.mxu0 0.0
        %301 = vmatprep.subr.mxu0 0.0
        %302 = vmatpush1.msra.mxu0 0.0
        %303 = vmatprep.subr.mxu0 0.0
        %304 = vmatpush1.msra.mxu0 0.0
        %305 = vmatprep.subr.mxu0 0.0
        %306 = vmatpush1.msra.mxu0 0.0
        %307 = vmatprep.mubr.f32.mxu0 0.0
        %308 = vmatmul.mubr.f32.gmra.mrb[0].mxu0 %v241
        %v309 = vpop.f32.mrb[0].mxu0
        %v310 = vadd.f32 0.0, %v309
        %v311 = vpop.f32.mrb[0].mxu0
        %312 = vdwg.mxu0
        %v313 = vadd.f32 %v233, %v310
        %vm314 = vcmask 64512
        %315 = vst.msk [vmem:[#allocation2] sm:$0xff] %vm314, %v313
        // Predicated region
        $region33: #{tpu_custom_call.1} parent=27 // pred_check
          %p316 = pneg %p227
        $region34: #{tpu_custom_call.1} parent=27 // pred_check_branch
          %318 = sbr.rel (%p316) target = $region36
        $region35: #{tpu_custom_call.1} parent=27 // pred_region
          %v319 = vld [vmem:[#allocation2] sm:$0xff]
          %320 = vst.msk [vmem:[%s206] sm:$0xff] %vm314, %v319
        $region36: #{tpu_custom_call.1} parent=27 // pred_fallthru
          _
        %s321 = sand.u32 %s112, 1
        %s322 = scalar_lea.sflag [#allocation4], %s321
        %s323 = sand.u32 %s112, 1
        %s324 = smul.addr %s323, 8
        %s325 = scalar_lea.vmem [#allocation3], %s324
        // Predicated region
        $region37: #{tpu_custom_call.1} parent=27 // pred_check
          %p326 = pneg %p122
        $region38: #{tpu_custom_call.1} parent=27 // pred_check_branch
          %328 = sbr.rel (%p326) target = $region40
        $region39: #{tpu_custom_call.1} parent=27 // pred_region
          %s330 = ssub.s32 128, 128
          %331 = vsyncadd %s322, %s330
          %s332 = sadd.s32 %s24, %s23
          %s333 = smul.addr %s22, 4
          %s334 = sadd.s32 %s332, %s333
          %s335 = smul.addr %s334, 128
          %s336 = scalar_lea.hbm %s2, %s335
          %s338 = sshll.u32 %s325, 4
          %s339 = int_to_ptr.vmem [resolvable:$true] %s338
          %341 = dma.vmem_to_hbm [thread:$0]  %s339, 128, %s336, %s322
        $region40: #{tpu_custom_call.1} parent=27 // pred_fallthru
          _
      $region28: #{tpu_custom_call.1} parent=5 // pred_fallthru
        _
      %p342 = scmp.le.s32.totalorder 2, %s11
      // Predicated region
      $region41: #{tpu_custom_call.1} parent=5 // pred_check
        %p343 = pneg %p342
      $region42: #{tpu_custom_call.1} parent=5 // pred_check_branch
        %345 = sbr.rel (%p343) target = $region44
      $region43: #{tpu_custom_call.1} parent=5 // pred_region
        %s346 = ssub.s32 %s11, 2
        // Predicated region
        $region45: #{tpu_custom_call.1} parent=43 // pred_check
          %p347 = pneg %p128
        $region46: #{tpu_custom_call.1} parent=43 // pred_check_branch
          %349 = sbr.rel (%p347) target = $region48
        $region47: #{tpu_custom_call.1} parent=43 // pred_region
          %s350 = sand.u32 %s113, 1
          %s351 = scalar_lea.sflag [#allocation4], %s350
          %s352 = sand.u32 %s113, 1
          %s353 = smul.addr %s352, 8
          %s354 = scalar_lea.vmem [#allocation3], %s353
          %355 = dma.done %s351, 128
        $region48: #{tpu_custom_call.1} parent=43 // pred_fallthru
          _
      $region44: #{tpu_custom_call.1} parent=5 // pred_fallthru
        _
    $region6: #{tpu_custom_call.1} parent=1 // loop_footer
      %s15 = sadd.s32 1, %s11
    $region7: #{tpu_custom_call.1} parent=1 // loop_footer_branch
      %10 = sbr.rel target = $region3
    $region8: #{tpu_custom_call.1} parent=1 // loop_exit
      _
    %356 = vsyncpa [#allocation4], 1
    %s357 = scalar_lea.sflag [#allocation4], 1
    %358 = vsyncpa %s357, 1

</llo_original>
